<compile_context>
chip_gen: v7x
topology: tpu7x:2x2x1
jax: 0.10.0
libtpu: 0.0.40
codegen_flags: <defaults>
</compile_context>

<pallas_src>
import functools

import jax
import jax.numpy as jnp
from jax.experimental import pallas as pl
from jax.experimental.pallas import tpu as pltpu


# ----------------------------------------------------------------------------
# helpers
# ----------------------------------------------------------------------------
def _pick_hw_tile(hw, cap=1024):
    """Largest divisor of HW <= cap, preferring multiples of 128, then 8."""
    if hw <= cap:
        return hw
    top = min(cap, hw)
    for m in range(top - top % 128, 0, -128):
        if m > 0 and hw % m == 0:
            return m
    for m in range(top - top % 8, 0, -8):
        if m > 0 and hw % m == 0:
            return m
    return hw


def _padded_f32_bytes(shape):
    s = list(shape)
    if len(s) >= 1:
        s[-1] = -(-s[-1] // 128) * 128
    if len(s) >= 2:
        s[-2] = -(-s[-2] // 8) * 8
    n = 1
    for d in s:
        n *= d
    return 4 * n


def _vmem_limit(block_shapes, scratch_shapes):
    need = sum(2 * _padded_f32_bytes(s) for s in block_shapes)      # double-buffered
    need += sum(_padded_f32_bytes(s) for s in scratch_shapes)
    return int(min(64 * 1024 * 1024, max(16 * 1024 * 1024, 4 * need)))


# ----------------------------------------------------------------------------
# Kernel A: fused channel score + softmax + fusion MLP -> dynamic depthwise
#           weight, transposed (KK, C), partial-summed over this core's batch.
#
# Grid = (core_split, batch_per_core, hw_tiles).  All math is transposed so C
# stays on the 128-lane dim:
#   G    = sum_hw_tiles  Xt^T Xt            (C, C)   bf16 MXU, f32 accumulate
#   T    = Wk G Wq^T = S^T                  (C, C)   softmax(S, dim=1) == row softmax of T
#   h^T  = W1 @ softmax(T) + b1             (Cr, C)
#   LayerNorm over the whole (Cr, C) block (torch LayerNorm([C, Cr])), ReLU
#   o^T  = W2 @ hn^T + b2                   (KK, C)
#   out[core] += o^T                        (partial batch sum; finalized in wrapper)
# ----------------------------------------------------------------------------
def _score_fusion_kernel(x_ref, wq_ref, wk_ref, w1_ref, b1_ref, g_ref, bt_ref,
                         w2_ref, b2_ref, o_ref, gram_ref, *,
                         temperature, eps=1e-5):
    b = pl.program_id(1)
    hw = pl.program_id(2)
    n_hw = pl.num_programs(2)

    @pl.when((b == 0) & (hw == 0))
    def _():
        o_ref[...] = jnp.zeros_like(o_ref)

    @pl.when(hw == 0)
    def _():
        gram_ref[...] = jnp.zeros_like(gram_ref)

    # bf16 on the MXU for the dominant-FLOPs Gram contraction, f32 accumulate.
    xb = x_ref[0].astype(jnp.bfloat16)                               # (THW, C)
    gram_ref[...] += jax.lax.dot_general(
        xb, xb, (((0,), (0,)), ((), ())),
        preferred_element_type=jnp.float32)                          # (C, C)

    @pl.when(hw == n_hw - 1)
    def _():
        gram = gram_ref[...]
        # T = S^T = Wk G Wq^T (uses G's symmetry), scaled by 1/temperature.
        t = jnp.dot(wk_ref[...], gram, preferred_element_type=jnp.float32)
        t = jax.lax.dot_general(t, wq_ref[...], (((1,), (1,)), ((), ())),
                                preferred_element_type=jnp.float32)
        t = t * (1.0 / temperature)

        # softmax(S, dim=1) == row-wise (lane) softmax of T.
        m = jnp.max(t, axis=-1, keepdims=True)
        e = jnp.exp(t - m)
        a_t = e * pl.reciprocal(jnp.sum(e, axis=-1, keepdims=True), approx=True)

        # Fusion MLP, transposed (C on lanes throughout).
        h = jnp.dot(w1_ref[...], a_t,
                    preferred_element_type=jnp.float32) + b1_ref[...]   # (Cr, C)
        mu = jnp.mean(h)
        var = jnp.mean((h - mu) ** 2)
        hn = (h - mu) * jax.lax.rsqrt(var + eps)
        hn = jnp.maximum(hn * g_ref[...] + bt_ref[...], 0.0)            # (Cr, C)
        o_t = jnp.dot(w2_ref[...], hn,
                      preferred_element_type=jnp.float32) + b2_ref[...]  # (KK, C)

        o_ref[0] = o_ref[0] + o_t


# ----------------------------------------------------------------------------
# Kernel B: single combined depthwise conv (dynamic+static weights pre-merged),
#           NHWC, zero-padding in VMEM scratch (halo-only memset), row-band
#           register-resident tap accumulation.
# ----------------------------------------------------------------------------
def _dwconv_kernel(x_ref, w_ref, b_ref, o_ref, xp_ref, *, H, W, C, k, p, band):
    Hp, Wp = H + 2 * p, W + 2 * p

    # interior written once; only the halo border is zero-filled
    xp_ref[p:p + H, p:p + W, :] = x_ref[0].astype(jnp.float32)
    if p > 0:
        xp_ref[0:p, :, :] = jnp.zeros((p, Wp, C), jnp.float32)
        xp_ref[p + H:Hp, :, :] = jnp.zeros((p, Wp, C), jnp.float32)
        xp_ref[:, 0:p, :] = jnp.zeros((Hp, p, C), jnp.float32)
        xp_ref[:, p + W:Wp, :] = jnp.zeros((Hp, p, C), jnp.float32)

    w_taps = [w_ref[i:i + 1, :] for i in range(k * k)]   # (1, C), hoisted loads
    bias = b_ref[...]                                    # (1, C)

    r0 = 0
    while r0 < H:                                        # static Python band loop
        rows = min(band, H - r0)
        acc = jnp.zeros((rows, W, C), jnp.float32)
        for dh in range(k):
            for dw in range(k):
                xs = xp_ref[r0 + dh:r0 + dh + rows, dw:dw + W, :]     # (rows, W, C)
                acc = acc + xs * w_taps[dh * k + dw]                  # lane bcast
        o_ref[0, r0:r0 + rows, :, :] = (acc + bias).astype(o_ref.dtype)
        r0 += rows


# ----------------------------------------------------------------------------
# NHWC-native forward (recommended integration path: no boundary transposes)
# ----------------------------------------------------------------------------
def self_conv2d_forward_nhwc(x, params, kernel_size, temperature, hw_tile=None):
    B, H, W, C = x.shape
    k = kernel_size
    assert k % 2 == 1, "odd kernel_size assumed (padding='same')"
    KK, p = k * k, k // 2
    HW = H * W
    Cr = params["w1"].shape[0]
    Hp, Wp = H + 2 * p, W + 2 * p

    if hw_tile is None:
        hw_tile = _pick_hw_tile(HW)
    assert HW % hw_tile == 0 and (hw_tile == HW or hw_tile % 8 == 0)
    n_hw = HW // hw_tile

    nc = 2 if (B >= 2 and B % 2 == 0) else 1     # per-core partial sums (v7x 2 TC)
    bpc = B // nc

    # ---- Kernel A: fused score + fusion MLP -> dynamic dw weight (KK, C) ----
    xf = x.reshape(B, HW, C)                     # free reshape (contiguous)
    vmem_a = _vmem_limit(
        [(1, hw_tile, C), (C, C), (C, C), (Cr, C), (Cr, 1), (Cr, C), (Cr, C),
         (KK, Cr), (KK, 1), (1, KK, C)],
        [(C, C)])
    partial = pl.pallas_call(
        functools.partial(_score_fusion_kernel, temperature=temperature),
        out_shape=jax.ShapeDtypeStruct((nc, KK, C), jnp.float32),
        grid_spec=pltpu.PrefetchScalarGridSpec(
            num_scalar_prefetch=0, grid=(nc, bpc, n_hw),
            in_specs=[pl.BlockSpec((1, hw_tile, C),
                                   lambda c, b, h: (c * bpc + b, h, 0)),
                      pl.BlockSpec((C, C), lambda c, b, h: (0, 0)),    # wq
                      pl.BlockSpec((C, C), lambda c, b, h: (0, 0)),    # wk
                      pl.BlockSpec((Cr, C), lambda c, b, h: (0, 0)),   # w1
                      pl.BlockSpec((Cr, 1), lambda c, b, h: (0, 0)),   # b1
                      pl.BlockSpec((Cr, C), lambda c, b, h: (0, 0)),   # ln gamma^T
                      pl.BlockSpec((Cr, C), lambda c, b, h: (0, 0)),   # ln beta^T
                      pl.BlockSpec((KK, Cr), lambda c, b, h: (0, 0)),  # w2
                      pl.BlockSpec((KK, 1), lambda c, b, h: (0, 0))],  # b2
            out_specs=pl.BlockSpec((1, KK, C), lambda c, b, h: (c, 0, 0)),
            scratch_shapes=[pltpu.VMEM((C, C), jnp.float32)]),
        compiler_params=pltpu.CompilerParams(
            dimension_semantics=("parallel", "arbitrary", "arbitrary"),
            vmem_limit_bytes=vmem_a),
    )(xf, params["wq"], params["wk"],
      params["w1"], params["b1"].reshape(Cr, 1),
      params["ln_g"].T, params["ln_b"].T,
      params["w2"], params["b2"].reshape(KK, 1))

    # tiny epilogue on (KK, C): batch mean + merge with static dw weight/bias
    dw_t = params["dw_w"].reshape(C, KK).T
    w_comb_t = 0.5 * (jnp.sum(partial, axis=0) * (1.0 / B) + dw_t)     # (KK, C)
    b_comb = (0.5 * (params["bias"] + params["dw_b"])).reshape(1, C)

    # ---- Kernel B: single combined depthwise conv, NHWC ---------------------
    band = max(1, min(8, (64 * 1024) // max(1, W * C * 4)))   # ~16 vregs of acc
    vmem_b = _vmem_limit(
        [(1, H, W, C), (1, H, W, C), (KK, C), (1, C)],
        [(Hp, Wp, C)])
    out = pl.pallas_call(
        functools.partial(_dwconv_kernel, H=H, W=W, C=C, k=k, p=p, band=band),
        out_shape=jax.ShapeDtypeStruct((B, H, W, C), x.dtype),
        grid_spec=pltpu.PrefetchScalarGridSpec(
            num_scalar_prefetch=0, grid=(B,),
            in_specs=[pl.BlockSpec((1, H, W, C), lambda b: (b, 0, 0, 0)),
                      pl.BlockSpec((KK, C), lambda b: (0, 0)),
                      pl.BlockSpec((1, C), lambda b: (0, 0))],
            out_specs=pl.BlockSpec((1, H, W, C), lambda b: (b, 0, 0, 0)),
            scratch_shapes=[pltpu.VMEM((Hp, Wp, C), jnp.float32)]),
        compiler_params=pltpu.CompilerParams(
            dimension_semantics=("parallel",), vmem_limit_bytes=vmem_b),
    )(x, w_comb_t, b_comb)
    return out


# ----------------------------------------------------------------------------
# NCHW compat shim (torch module boundary).  Per the perf review, NHWC-native
# callers should use self_conv2d_forward_nhwc directly and skip these two
# boundary transposes.
# ----------------------------------------------------------------------------
def self_conv2d_forward(x, params, kernel_size, temperature, hw_tile=None):
    x_nhwc = jnp.transpose(x, (0, 2, 3, 1))
    out = self_conv2d_forward_nhwc(x_nhwc, params, kernel_size, temperature,
                                   hw_tile=hw_tile)
    return jnp.transpose(out, (0, 3, 1, 2))


# ----------------------------------------------------------------------------
# Pure-JAX reference (sanity check only, NCHW like the torch module)
# ----------------------------------------------------------------------------
def reference_forward(x, params, k, temperature):
    B, C, H, W = x.shape
    KK, p = k * k, k // 2
    hi = jax.lax.Precision.HIGHEST
    xf = x.reshape(B, C, H * W)
    q = jnp.einsum("oc,bcs->bos", params["wq"], xf, precision=hi)
    kt = jnp.einsum("oc,bcs->bos", params["wk"], xf, precision=hi)
    s = jnp.einsum("bis,bjs->bij", q, kt, precision=hi) / temperature
    s = jax.nn.softmax(s, axis=1)
    h = jnp.einsum("bij,rj->bir", s, params["w1"], precision=hi) + params["b1"]
    mu = jnp.mean(h, axis=(1, 2), keepdims=True)
    var = jnp.mean((h - mu) ** 2, axis=(1, 2), keepdims=True)
    hn = (h - mu) / jnp.sqrt(var + 1e-5) * params["ln_g"] + params["ln_b"]
    hn = jnp.maximum(hn, 0.0)
    wd = jnp.einsum("bir,kr->bik", hn, params["w2"], precision=hi) + params["b2"]
    wd = jnp.mean(wd, axis=0)                            # (C, KK)
    xp = jnp.pad(x, ((0, 0), (0, 0), (p, p), (p, p)))

    def dwc(wflat):
        o = jnp.zeros((B, C, H, W), jnp.float32)
        for dh in range(k):
            for dw in range(k):
                o = o + xp[:, :, dh:dh + H, dw:dw + W] * \
                    wflat[None, :, dh * k + dw, None, None]
        return o

    out1 = dwc(wd) + params["bias"][None, :, None, None]
    out2 = dwc(params["dw_w"].reshape(C, KK)) + params["dw_b"][None, :, None, None]
    return (out1 + out2) / 2


# ----------------------------------------------------------------------------
if __name__ == "__main__":
    B, C, H, W = 2, 8, 16, 16
    kernel_size, reduction, temperature = 3, 4, 2.0
    Cr, KK = C // reduction, kernel_size * kernel_size

    key = jax.random.PRNGKey(0)
    ks = jax.random.split(key, 11)

    # Deterministic synthetic parameters (shapes match the torch module).
    params = {
        "wq":   0.1 * jax.random.normal(ks[0], (C, C), jnp.float32),      # 1x1 conv
        "wk":   0.1 * jax.random.normal(ks[1], (C, C), jnp.float32),      # 1x1 conv
        "w1":   0.3 * jax.random.normal(ks[2], (Cr, C), jnp.float32),     # Linear1
        "b1":   0.1 * jax.random.normal(ks[3], (Cr,), jnp.float32),
        "ln_g": 1.0 + 0.1 * jax.random.normal(ks[4], (C, Cr), jnp.float32),
        "ln_b": 0.1 * jax.random.normal(ks[5], (C, Cr), jnp.float32),
        "w2":   0.3 * jax.random.normal(ks[6], (KK, Cr), jnp.float32),    # Linear2
        "b2":   0.1 * jax.random.normal(ks[7], (KK,), jnp.float32),
        "bias": jnp.zeros((C,), jnp.float32),                             # nn.Parameter
        "dw_w": 0.1 * jax.random.normal(ks[8], (C, 1, kernel_size, kernel_size),
                                        jnp.float32),                     # dwconv weight
        "dw_b": 0.1 * jax.random.normal(ks[9], (C,), jnp.float32),        # dwconv bias
    }

    x = jax.random.normal(ks[10], (B, C, H, W), jnp.float32)
    ref = reference_forward(x, params, kernel_size, temperature)

    # NHWC-native path (recommended integration; no boundary transposes).
    # hw_tile=128 splits HW=256 into two grid steps to exercise the tiled
    # Gram accumulation.
    x_nhwc = jnp.transpose(x, (0, 2, 3, 1))
    out_nhwc = self_conv2d_forward_nhwc(x_nhwc, params, kernel_size, temperature,
                                        hw_tile=128)
    out_nhwc = jax.block_until_ready(out_nhwc)
    assert out_nhwc.shape == (B, H, W, C), out_nhwc.shape
    err_native = float(jnp.max(jnp.abs(jnp.transpose(out_nhwc, (0, 3, 1, 2)) - ref)))
    assert err_native < 5e-2, f"NHWC-native max abs error {err_native}"

    # NCHW compat shim (matches the torch module boundary).
    out_nchw = self_conv2d_forward(x, params, kernel_size, temperature, hw_tile=128)
    out_nchw = jax.block_until_ready(out_nchw)
    assert out_nchw.shape == (B, C, H, W), out_nchw.shape
    err_shim = float(jnp.max(jnp.abs(out_nchw - ref)))
    assert err_shim < 5e-2, f"NCHW shim max abs error {err_shim}"

    print("KERNEL_OK")
</pallas_src>

<mosaic_0001>
module attributes {stable_mosaic.version = 11 : i64} {
  func.func @_score_fusion_kernel(%arg0: i32, %arg1: i32, %arg2: i32, %arg3: memref<1x128x8xf32, #tpu.memory_space<vmem>>, %arg4: memref<8x8xf32, #tpu.memory_space<vmem>>, %arg5: memref<8x8xf32, #tpu.memory_space<vmem>>, %arg6: memref<2x8xf32, #tpu.memory_space<vmem>>, %arg7: memref<2x1xf32, #tpu.memory_space<vmem>>, %arg8: memref<2x8xf32, #tpu.memory_space<vmem>>, %arg9: memref<2x8xf32, #tpu.memory_space<vmem>>, %arg10: memref<9x2xf32, #tpu.memory_space<vmem>>, %arg11: memref<9x1xf32, #tpu.memory_space<vmem>>, %arg12: memref<1x9x8xf32, #tpu.memory_space<vmem>>, %arg13: memref<8x8xf32, #tpu.memory_space<vmem>>) attributes {dimension_semantics = [#tpu.dimension_semantics<parallel>, #tpu.dimension_semantics<arbitrary>, #tpu.dimension_semantics<arbitrary>], iteration_bounds = array<i64: 2, 1, 2>, scalar_prefetch = 0 : i64, scratch_operands = 1 : i64, tpu.core_type = #tpu.core_type<tc>, window_params = [{transform_indices = @transform_0, window_bounds = array<i64: 1, 128, 8>}, {pipeline_mode = #tpu.pipeline_mode<synchronous>, transform_indices = @transform_1, window_bounds = array<i64: 8, 8>}, {pipeline_mode = #tpu.pipeline_mode<synchronous>, transform_indices = @transform_2, window_bounds = array<i64: 8, 8>}, {pipeline_mode = #tpu.pipeline_mode<synchronous>, transform_indices = @transform_3, window_bounds = array<i64: 2, 8>}, {pipeline_mode = #tpu.pipeline_mode<synchronous>, transform_indices = @transform_4, window_bounds = array<i64: 2, 1>}, {pipeline_mode = #tpu.pipeline_mode<synchronous>, transform_indices = @transform_5, window_bounds = array<i64: 2, 8>}, {pipeline_mode = #tpu.pipeline_mode<synchronous>, transform_indices = @transform_6, window_bounds = array<i64: 2, 8>}, {pipeline_mode = #tpu.pipeline_mode<synchronous>, transform_indices = @transform_7, window_bounds = array<i64: 9, 2>}, {pipeline_mode = #tpu.pipeline_mode<synchronous>, transform_indices = @transform_8, window_bounds = array<i64: 9, 1>}, {transform_indices = @transform_9, window_bounds = array<i64: 1, 9, 8>}]} {
    %c0_i32 = arith.constant 0 : i32
    %0 = arith.cmpi eq, %arg1, %c0_i32 : i32
    %c0_i32_0 = arith.constant 0 : i32
    %1 = arith.cmpi eq, %arg2, %c0_i32_0 : i32
    %2 = arith.andi %0, %1 : i1
    %3 = arith.extui %2 : i1 to i32
    %c0_i32_1 = arith.constant 0 : i32
    %4 = arith.cmpi ne, %3, %c0_i32_1 : i32
    scf.if %4 {
      %cst_11 = arith.constant 0.000000e+00 : f32
      %18 = vector.broadcast %cst_11 : f32 to vector<1x9x8xf32>
      %c0_12 = arith.constant 0 : index
      %c0_13 = arith.constant 0 : index
      %c0_14 = arith.constant 0 : index
      %19 = vector.load %arg12[%c0_12, %c0_13, %c0_14] : memref<1x9x8xf32, #tpu.memory_space<vmem>>, vector<1x9x8xf32>
      tpu.vector_store %arg12[%c0_12, %c0_13, %c0_14], %18 {strides = array<i32>} : memref<1x9x8xf32, #tpu.memory_space<vmem>>, vector<1x9x8xf32>,
    } else {
    }
    %c0_i32_2 = arith.constant 0 : i32
    %5 = arith.cmpi eq, %arg2, %c0_i32_2 : i32
    %6 = arith.extui %5 : i1 to i32
    %c0_i32_3 = arith.constant 0 : i32
    %7 = arith.cmpi ne, %6, %c0_i32_3 : i32
    scf.if %7 {
      %cst_11 = arith.constant 0.000000e+00 : f32
      %18 = vector.broadcast %cst_11 : f32 to vector<8x8xf32>
      %c0_12 = arith.constant 0 : index
      %c0_13 = arith.constant 0 : index
      %19 = vector.load %arg13[%c0_12, %c0_13] : memref<8x8xf32, #tpu.memory_space<vmem>>, vector<8x8xf32>
      tpu.vector_store %arg13[%c0_12, %c0_13], %18 {strides = array<i32>} : memref<8x8xf32, #tpu.memory_space<vmem>>, vector<8x8xf32>,
    } else {
    }
    %c0 = arith.constant 0 : index
    %c0_4 = arith.constant 0 : index
    %c0_5 = arith.constant 0 : index
    %8 = vector.load %arg3[%c0, %c0_4, %c0_5] : memref<1x128x8xf32, #tpu.memory_space<vmem>>, vector<1x128x8xf32>
    %9 = vector.shape_cast %8 : vector<1x128x8xf32> to vector<128x8xf32>
    %10 = arith.truncf %9 : vector<128x8xf32> to vector<128x8xbf16>
    %c0_6 = arith.constant 0 : index
    %c0_7 = arith.constant 0 : index
    %11 = vector.load %arg13[%c0_6, %c0_7] : memref<8x8xf32, #tpu.memory_space<vmem>>, vector<8x8xf32>
    %cst = arith.constant dense<0.000000e+00> : vector<8x8xf32>
    %12 = tpu.matmul %10, %10, %cst {dimension_numbers = #tpu.dot_dimension_numbers<[0], [0], [1], [1], [0, 1, 1, 1], [], []>} : vector<128x8xbf16>, vector<128x8xbf16>, vector<8x8xf32> -> vector<8x8xf32>
    %13 = arith.addf %11, %12 : vector<8x8xf32>
    %c0_8 = arith.constant 0 : index
    %c0_9 = arith.constant 0 : index
    %14 = vector.load %arg13[%c0_8, %c0_9] : memref<8x8xf32, #tpu.memory_space<vmem>>, vector<8x8xf32>
    tpu.vector_store %arg13[%c0_8, %c0_9], %13 {strides = array<i32>} : memref<8x8xf32, #tpu.memory_space<vmem>>, vector<8x8xf32>,
    %c1_i32 = arith.constant 1 : i32
    %15 = arith.cmpi eq, %arg2, %c1_i32 : i32
    %16 = arith.extui %15 : i1 to i32
    %c0_i32_10 = arith.constant 0 : i32
    %17 = arith.cmpi ne, %16, %c0_i32_10 : i32
    scf.if %17 {
      %c0_11 = arith.constant 0 : index
      %c0_12 = arith.constant 0 : index
      %18 = vector.load %arg13[%c0_11, %c0_12] : memref<8x8xf32, #tpu.memory_space<vmem>>, vector<8x8xf32>
      %c0_13 = arith.constant 0 : index
      %c0_14 = arith.constant 0 : index
      %19 = vector.load %arg5[%c0_13, %c0_14] : memref<8x8xf32, #tpu.memory_space<vmem>>, vector<8x8xf32>
      %cst_15 = arith.constant dense<0.000000e+00> : vector<8x8xf32>
      %20 = tpu.matmul %19, %18, %cst_15 {dimension_numbers = #tpu.dot_dimension_numbers<[1], [0], [0], [1], [0, 0, 1, 1], [], []>} : vector<8x8xf32>, vector<8x8xf32>, vector<8x8xf32> -> vector<8x8xf32>
      %c0_16 = arith.constant 0 : index
      %c0_17 = arith.constant 0 : index
      %21 = vector.load %arg4[%c0_16, %c0_17] : memref<8x8xf32, #tpu.memory_space<vmem>>, vector<8x8xf32>
      %cst_18 = arith.constant dense<0.000000e+00> : vector<8x8xf32>
      %22 = tpu.matmul %20, %21, %cst_18 {dimension_numbers = #tpu.dot_dimension_numbers<[1], [1], [0], [0], [0, 0, 1, 0], [], []>} : vector<8x8xf32>, vector<8x8xf32>, vector<8x8xf32> -> vector<8x8xf32>
      %cst_19 = arith.constant 5.000000e-01 : f32
      %23 = vector.broadcast %cst_19 : f32 to vector<8x8xf32>
      %24 = arith.mulf %22, %23 : vector<8x8xf32>
      %cst_20 = arith.constant dense<0xFF800000> : vector<8xf32>
      %25 = vector.multi_reduction <maximumf>, %24, %cst_20 [1] : vector<8x8xf32> to vector<8xf32>
      %26 = vector.shape_cast %25 : vector<8xf32> to vector<8x1xf32>
      %27 = vector.broadcast %26 : vector<8x1xf32> to vector<8x8xf32>
      %28 = arith.subf %24, %27 : vector<8x8xf32>
      %29 = math.exp %28 : vector<8x8xf32>
      %cst_21 = arith.constant dense<0.000000e+00> : vector<8xf32>
      %30 = vector.multi_reduction <add>, %29, %cst_21 [1] : vector<8x8xf32> to vector<8xf32>
      %31 = vector.shape_cast %30 : vector<8xf32> to vector<8x1xf32>
      %32 = tpu.reciprocal %31 {approx = true} : vector<8x1xf32> -> vector<8x1xf32>
      %33 = vector.broadcast %32 : vector<8x1xf32> to vector<8x8xf32>
      %34 = arith.mulf %29, %33 : vector<8x8xf32>
      %c0_22 = arith.constant 0 : index
      %c0_23 = arith.constant 0 : index
      %35 = vector.load %arg6[%c0_22, %c0_23] : memref<2x8xf32, #tpu.memory_space<vmem>>, vector<2x8xf32>
      %cst_24 = arith.constant dense<0.000000e+00> : vector<2x8xf32>
      %36 = tpu.matmul %35, %34, %cst_24 {dimension_numbers = #tpu.dot_dimension_numbers<[1], [0], [0], [1], [0, 0, 1, 1], [], []>} : vector<2x8xf32>, vector<8x8xf32>, vector<2x8xf32> -> vector<2x8xf32>
      %c0_25 = arith.constant 0 : index
      %c0_26 = arith.constant 0 : index
      %37 = vector.load %arg7[%c0_25, %c0_26] : memref<2x1xf32, #tpu.memory_space<vmem>>, vector<2x1xf32>
      %38 = vector.broadcast %37 : vector<2x1xf32> to vector<2x8xf32>
      %39 = arith.addf %36, %38 : vector<2x8xf32>
      %40 = vector.shape_cast %39 : vector<2x8xf32> to vector<1x2x8xf32>
      %cst_27 = arith.constant dense<0.000000e+00> : vector<1xf32>
      %41 = vector.multi_reduction <add>, %40, %cst_27 [1, 2] : vector<1x2x8xf32> to vector<1xf32>
      %42 = vector.shape_cast %41 : vector<1xf32> to vector<1x1x1xf32>
      %43 = vector.extract %42[0, 0, 0] : f32 from vector<1x1x1xf32>
      %cst_28 = arith.constant 1.600000e+01 : f32
      %44 = arith.divf %43, %cst_28 : f32
      %45 = vector.broadcast %44 : f32 to vector<2x8xf32>
      %46 = arith.subf %39, %45 : vector<2x8xf32>
      %47 = arith.mulf %46, %46 : vector<2x8xf32>
      %48 = vector.shape_cast %47 : vector<2x8xf32> to vector<1x2x8xf32>
      %cst_29 = arith.constant dense<0.000000e+00> : vector<1xf32>
      %49 = vector.multi_reduction <add>, %48, %cst_29 [1, 2] : vector<1x2x8xf32> to vector<1xf32>
      %50 = vector.shape_cast %49 : vector<1xf32> to vector<1x1x1xf32>
      %51 = vector.extract %50[0, 0, 0] : f32 from vector<1x1x1xf32>
      %cst_30 = arith.constant 1.600000e+01 : f32
      %52 = arith.divf %51, %cst_30 : f32
      %53 = vector.broadcast %44 : f32 to vector<2x8xf32>
      %54 = arith.subf %39, %53 : vector<2x8xf32>
      %cst_31 = arith.constant 9.99999974E-6 : f32
      %55 = arith.addf %52, %cst_31 : f32
      %56 = math.rsqrt %55 : f32
      %57 = vector.broadcast %56 : f32 to vector<2x8xf32>
      %58 = arith.mulf %54, %57 : vector<2x8xf32>
      %c0_32 = arith.constant 0 : index
      %c0_33 = arith.constant 0 : index
      %59 = vector.load %arg8[%c0_32, %c0_33] : memref<2x8xf32, #tpu.memory_space<vmem>>, vector<2x8xf32>
      %60 = arith.mulf %58, %59 : vector<2x8xf32>
      %c0_34 = arith.constant 0 : index
      %c0_35 = arith.constant 0 : index
      %61 = vector.load %arg9[%c0_34, %c0_35] : memref<2x8xf32, #tpu.memory_space<vmem>>, vector<2x8xf32>
      %62 = arith.addf %60, %61 : vector<2x8xf32>
      %cst_36 = arith.constant 0.000000e+00 : f32
      %63 = vector.broadcast %cst_36 : f32 to vector<2x8xf32>
      %64 = arith.maximumf %62, %63 : vector<2x8xf32>
      %c0_37 = arith.constant 0 : index
      %c0_38 = arith.constant 0 : index
      %65 = vector.load %arg10[%c0_37, %c0_38] : memref<9x2xf32, #tpu.memory_space<vmem>>, vector<9x2xf32>
      %cst_39 = arith.constant dense<0.000000e+00> : vector<9x8xf32>
      %66 = tpu.matmul %65, %64, %cst_39 {dimension_numbers = #tpu.dot_dimension_numbers<[1], [0], [0], [1], [0, 0, 1, 1], [], []>} : vector<9x2xf32>, vector<2x8xf32>, vector<9x8xf32> -> vector<9x8xf32>
      %c0_40 = arith.constant 0 : index
      %c0_41 = arith.constant 0 : index
      %67 = vector.load %arg11[%c0_40, %c0_41] : memref<9x1xf32, #tpu.memory_space<vmem>>, vector<9x1xf32>
      %68 = vector.broadcast %67 : vector<9x1xf32> to vector<9x8xf32>
      %69 = arith.addf %66, %68 : vector<9x8xf32>
      %c0_42 = arith.constant 0 : index
      %c0_43 = arith.constant 0 : index
      %c0_44 = arith.constant 0 : index
      %70 = vector.load %arg12[%c0_42, %c0_43, %c0_44] : memref<1x9x8xf32, #tpu.memory_space<vmem>>, vector<1x9x8xf32>
      %71 = vector.shape_cast %70 : vector<1x9x8xf32> to vector<9x8xf32>
      %72 = arith.addf %71, %69 : vector<9x8xf32>
      %c0_45 = arith.constant 0 : index
      %c0_46 = arith.constant 0 : index
      %c0_47 = arith.constant 0 : index
      %73 = vector.load %arg12[%c0_45, %c0_46, %c0_47] : memref<1x9x8xf32, #tpu.memory_space<vmem>>, vector<1x9x8xf32>
      %74 = vector.shape_cast %73 : vector<1x9x8xf32> to vector<9x8xf32>
      %75 = vector.shape_cast %72 : vector<9x8xf32> to vector<1x9x8xf32>
      tpu.vector_store %arg12[%c0_45, %c0_46, %c0_47], %75 {strides = array<i32>} : memref<1x9x8xf32, #tpu.memory_space<vmem>>, vector<1x9x8xf32>,
    } else {
    }
    return
  }
  func.func @transform_0(%arg0: i32, %arg1: i32, %arg2: i32) -> (i32, i32, i32) {
    %c1_i32 = arith.constant 1 : i32
    %0 = arith.muli %arg0, %c1_i32 : i32
    %1 = arith.addi %0, %arg1 : i32
    %c0_i32 = arith.constant 0 : i32
    %c0_i32_0 = arith.constant 0 : i32
    return %1, %arg2, %c0_i32 : i32, i32, i32
  }
  func.func @transform_1(%arg0: i32, %arg1: i32, %arg2: i32) -> (i32, i32) {
    %c0_i32 = arith.constant 0 : i32
    %c0_i32_0 = arith.constant 0 : i32
    %c0_i32_1 = arith.constant 0 : i32
    return %c0_i32, %c0_i32_0 : i32, i32
  }
  func.func @transform_2(%arg0: i32, %arg1: i32, %arg2: i32) -> (i32, i32) {
    %c0_i32 = arith.constant 0 : i32
    %c0_i32_0 = arith.constant 0 : i32
    %c0_i32_1 = arith.constant 0 : i32
    return %c0_i32, %c0_i32_0 : i32, i32
  }
  func.func @transform_3(%arg0: i32, %arg1: i32, %arg2: i32) -> (i32, i32) {
    %c0_i32 = arith.constant 0 : i32
    %c0_i32_0 = arith.constant 0 : i32
    %c0_i32_1 = arith.constant 0 : i32
    return %c0_i32, %c0_i32_0 : i32, i32
  }
  func.func @transform_4(%arg0: i32, %arg1: i32, %arg2: i32) -> (i32, i32) {
    %c0_i32 = arith.constant 0 : i32
    %c0_i32_0 = arith.constant 0 : i32
    %c0_i32_1 = arith.constant 0 : i32
    return %c0_i32, %c0_i32_0 : i32, i32
  }
  func.func @transform_5(%arg0: i32, %arg1: i32, %arg2: i32) -> (i32, i32) {
    %c0_i32 = arith.constant 0 : i32
    %c0_i32_0 = arith.constant 0 : i32
    %c0_i32_1 = arith.constant 0 : i32
    return %c0_i32, %c0_i32_0 : i32, i32
  }
  func.func @transform_6(%arg0: i32, %arg1: i32, %arg2: i32) -> (i32, i32) {
    %c0_i32 = arith.constant 0 : i32
    %c0_i32_0 = arith.constant 0 : i32
    %c0_i32_1 = arith.constant 0 : i32
    return %c0_i32, %c0_i32_0 : i32, i32
  }
  func.func @transform_7(%arg0: i32, %arg1: i32, %arg2: i32) -> (i32, i32) {
    %c0_i32 = arith.constant 0 : i32
    %c0_i32_0 = arith.constant 0 : i32
    %c0_i32_1 = arith.constant 0 : i32
    return %c0_i32, %c0_i32_0 : i32, i32
  }
  func.func @transform_8(%arg0: i32, %arg1: i32, %arg2: i32) -> (i32, i32) {
    %c0_i32 = arith.constant 0 : i32
    %c0_i32_0 = arith.constant 0 : i32
    %c0_i32_1 = arith.constant 0 : i32
    return %c0_i32, %c0_i32_0 : i32, i32
  }
  func.func @transform_9(%arg0: i32, %arg1: i32, %arg2: i32) -> (i32, i32, i32) {
    %c0_i32 = arith.constant 0 : i32
    %c0_i32_0 = arith.constant 0 : i32
    %c0_i32_1 = arith.constant 0 : i32
    return %arg0, %c0_i32, %c0_i32_0 : i32, i32, i32
  }
}

</mosaic_0001>

<llo_original>
// kernel: tpu_custom_call.1
$region0: #{tpu_custom_call.1}
  #allocation0 [shape = 'u32[]', space=smem, size = 0x4, offset = 0x4, fixed_abs, tag = 'smem constant byte address 0x4 - core index']
  #allocation1 [shape = 'u32[144,128]{1,0:T(1,128)}', space=vmem, size = 0x12000, scoped, tag = 'internal scratch']
  #allocation2 [shape = 'f32[8,8]{1,0:T(8,128)}', space=vmem, size = 0x1000, scoped, tag = 'scratch operand']
  %s0 = inlined_call_operand.vmem [shape: f32[2,256,8], index: 0, kind: input, shape index: {}]
  %s1 = inlined_call_operand.vmem [shape: f32[8,8], index: 1, kind: input, shape index: {}]
  %s2 = inlined_call_operand.vmem [shape: f32[8,8], index: 2, kind: input, shape index: {}]
  %s3 = inlined_call_operand.vmem [shape: f32[2,8], index: 3, kind: input, shape index: {}]
  %s4 = inlined_call_operand.vmem [shape: f32[2,1], index: 4, kind: input, shape index: {}]
  %s5 = inlined_call_operand.vmem [shape: f32[2,8], index: 5, kind: input, shape index: {}]
  %s6 = inlined_call_operand.vmem [shape: f32[2,8], index: 6, kind: input, shape index: {}]
  %s7 = inlined_call_operand.vmem [shape: f32[9,2], index: 7, kind: input, shape index: {}]
  %s8 = inlined_call_operand.vmem [shape: f32[9,1], index: 8, kind: input, shape index: {}]
  %s9 = inlined_call_operand.vmem [shape: f32[2,9,8], index: 9, kind: output, shape index: {}]
  %s10 = sld [smem:[#allocation0]]
  $region81: #{tpu_custom_call.1} parent=0
    _
  %s12 = ssub.s32 1, %s10
  %s13 = scalar_select 0, %s12, %s10
  loop: start=0, step=1, limit=6
  $region2: #{tpu_custom_call.1} parent=0 // loop_pre_header
    _
  $region3: #{tpu_custom_call.1} parent=0 // loop_header
    %s15 = sphi 0, %s19
    %p16 = scmp.ge.s32.totalorder %s15, 6
    %s22 = sphi 0, %s41
    %s23 = sphi 0, %s37
    %s24 = sphi 0, %s33
    %s25 = sphi 0, %s22
    %s26 = sphi 0, %s23
    %s27 = sphi 0, %s24
    %s28 = sphi 0, %s25
    %s29 = sphi 0, %s26
    %s30 = sphi 0, %s27
    %s48 = sphi 0, %s50
    %s51 = sphi 0, %s48
    %s52 = sphi 0, %s51
    %s68 = sphi 0, %s52
    %s72 = sphi 0, %s72
    %s74 = sphi 0, %s72
    %s75 = sphi 0, %s74
    %s89 = sphi 0, %s75
    %s93 = sphi 0, %s93
    %s95 = sphi 0, %s93
    %s96 = sphi 0, %s95
    %s110 = sphi 0, %s96
    %s114 = sphi 0, %s114
    %s116 = sphi 0, %s114
    %s117 = sphi 0, %s116
    %s131 = sphi 0, %s117
    %s135 = sphi 0, %s135
    %s137 = sphi 0, %s135
    %s138 = sphi 0, %s137
    %s152 = sphi 0, %s138
    %s156 = sphi 0, %s156
    %s158 = sphi 0, %s156
    %s159 = sphi 0, %s158
    %s173 = sphi 0, %s159
    %s177 = sphi 0, %s177
    %s179 = sphi 0, %s177
    %s180 = sphi 0, %s179
    %s194 = sphi 0, %s180
    %s198 = sphi 0, %s198
    %s200 = sphi 0, %s198
    %s201 = sphi 0, %s200
    %s215 = sphi 0, %s201
    %s219 = sphi 0, %s219
    %s221 = sphi 0, %s219
    %s222 = sphi 0, %s221
    %s236 = sphi 0, %s222
    %s242 = sphi 0, %s244
    %s245 = sphi 0, %s242
    %s246 = sphi 0, %s245
    %s262 = sphi 0, %s246
  $region4: #{tpu_custom_call.1} parent=0 // loop_header_branch
    %18 = sbr.rel (%p16) target = $region8
  $region5: #{tpu_custom_call.1} parent=0 // loop_body
    %s20 = ssub.s32 %s15, 1
    %s21 = ssub.s32 %s15, 2
    %s31 = sadd.s32 1, %s24
    %p32 = scmp.ge.s32.totalorder %s31, 2
    %s33 = scalar_select %p32, 0, %s31
    %s34 = sadd.s32 1, %s23
    %s35 = scalar_select %p32, %s34, %s23
    %p36 = scmp.ge.s32.totalorder %s35, 1
    %s37 = scalar_select %p36, 0, %s35
    %s38 = sadd.s32 1, %s22
    %s39 = scalar_select %p36, %s38, %s22
    %p40 = scmp.ge.s32.totalorder %s39, 2
    %s41 = scalar_select %p40, 0, %s39
    %s42 = sadd.s32 %s22, %s23
    %s43 = sadd.s32 %s41, %s37
    %s44 = ssub.s32 %s42, %s43
    %s45 = ssub.s32 %s24, %s33
    %s46 = sor.u32 %s44, %s45
    %p47 = scmp.eq.s32.totalorder %s46, 0
    %s49 = sadd.s32 %s48, 1
    %s50 = scalar_select %p47, %s48, %s49
    %p53 = pneg %p47
    %p54 = scmp.eq.s32.totalorder %s15, 3
    %p55 = por %p53, %p54
    %p56 = scmp.ne.s32.totalorder %s48, %s51
    %p57 = scmp.eq.s32.totalorder %s15, 0
    %p58 = por %p56, %p57
    %p59 = scmp.ne.s32.totalorder %s48, %s51
    %p60 = scmp.eq.s32.totalorder %s20, 3
    %p61 = por %p59, %p60
    %p62 = scmp.ne.s32.totalorder %s51, %s52
    %p63 = scmp.eq.s32.totalorder %s20, 0
    %p64 = por %p62, %p63
    %p65 = scmp.ne.s32.totalorder %s51, %s52
    %p66 = scmp.eq.s32.totalorder %s21, 3
    %p67 = por %p65, %p66
    %p69 = scmp.ne.s32.totalorder %s52, %s68
    %p70 = scmp.eq.s32.totalorder %s21, 0
    %p71 = por %p69, %p70
    %s73 = sadd.s32 %s72, 1
    %p76 = scmp.eq.s32.totalorder %s15, 3
    %p77 = scmp.ne.s32.totalorder %s72, %s74
    %p78 = scmp.eq.s32.totalorder %s15, 0
    %p79 = por %p77, %p78
    %p80 = scmp.ne.s32.totalorder %s72, %s74
    %p81 = scmp.eq.s32.totalorder %s20, 3
    %p82 = por %p80, %p81
    %p83 = scmp.ne.s32.totalorder %s74, %s75
    %p84 = scmp.eq.s32.totalorder %s20, 0
    %p85 = por %p83, %p84
    %p86 = scmp.ne.s32.totalorder %s74, %s75
    %p87 = scmp.eq.s32.totalorder %s21, 3
    %p88 = por %p86, %p87
    %p90 = scmp.ne.s32.totalorder %s75, %s89
    %p91 = scmp.eq.s32.totalorder %s21, 0
    %p92 = por %p90, %p91
    %s94 = sadd.s32 %s93, 1
    %p97 = scmp.eq.s32.totalorder %s15, 3
    %p98 = scmp.ne.s32.totalorder %s93, %s95
    %p99 = scmp.eq.s32.totalorder %s15, 0
    %p100 = por %p98, %p99
    %p101 = scmp.ne.s32.totalorder %s93, %s95
    %p102 = scmp.eq.s32.totalorder %s20, 3
    %p103 = por %p101, %p102
    %p104 = scmp.ne.s32.totalorder %s95, %s96
    %p105 = scmp.eq.s32.totalorder %s20, 0
    %p106 = por %p104, %p105
    %p107 = scmp.ne.s32.totalorder %s95, %s96
    %p108 = scmp.eq.s32.totalorder %s21, 3
    %p109 = por %p107, %p108
    %p111 = scmp.ne.s32.totalorder %s96, %s110
    %p112 = scmp.eq.s32.totalorder %s21, 0
    %p113 = por %p111, %p112
    %s115 = sadd.s32 %s114, 1
    %p118 = scmp.eq.s32.totalorder %s15, 3
    %p119 = scmp.ne.s32.totalorder %s114, %s116
    %p120 = scmp.eq.s32.totalorder %s15, 0
    %p121 = por %p119, %p120
    %p122 = scmp.ne.s32.totalorder %s114, %s116
    %p123 = scmp.eq.s32.totalorder %s20, 3
    %p124 = por %p122, %p123
    %p125 = scmp.ne.s32.totalorder %s116, %s117
    %p126 = scmp.eq.s32.totalorder %s20, 0
    %p127 = por %p125, %p126
    %p128 = scmp.ne.s32.totalorder %s116, %s117
    %p129 = scmp.eq.s32.totalorder %s21, 3
    %p130 = por %p128, %p129
    %p132 = scmp.ne.s32.totalorder %s117, %s131
    %p133 = scmp.eq.s32.totalorder %s21, 0
    %p134 = por %p132, %p133
    %s136 = sadd.s32 %s135, 1
    %p139 = scmp.eq.s32.totalorder %s15, 3
    %p140 = scmp.ne.s32.totalorder %s135, %s137
    %p141 = scmp.eq.s32.totalorder %s15, 0
    %p142 = por %p140, %p141
    %p143 = scmp.ne.s32.totalorder %s135, %s137
    %p144 = scmp.eq.s32.totalorder %s20, 3
    %p145 = por %p143, %p144
    %p146 = scmp.ne.s32.totalorder %s137, %s138
    %p147 = scmp.eq.s32.totalorder %s20, 0
    %p148 = por %p146, %p147
    %p149 = scmp.ne.s32.totalorder %s137, %s138
    %p150 = scmp.eq.s32.totalorder %s21, 3
    %p151 = por %p149, %p150
    %p153 = scmp.ne.s32.totalorder %s138, %s152
    %p154 = scmp.eq.s32.totalorder %s21, 0
    %p155 = por %p153, %p154
    %s157 = sadd.s32 %s156, 1
    %p160 = scmp.eq.s32.totalorder %s15, 3
    %p161 = scmp.ne.s32.totalorder %s156, %s158
    %p162 = scmp.eq.s32.totalorder %s15, 0
    %p163 = por %p161, %p162
    %p164 = scmp.ne.s32.totalorder %s156, %s158
    %p165 = scmp.eq.s32.totalorder %s20, 3
    %p166 = por %p164, %p165
    %p167 = scmp.ne.s32.totalorder %s158, %s159
    %p168 = scmp.eq.s32.totalorder %s20, 0
    %p169 = por %p167, %p168
    %p170 = scmp.ne.s32.totalorder %s158, %s159
    %p171 = scmp.eq.s32.totalorder %s21, 3
    %p172 = por %p170, %p171
    %p174 = scmp.ne.s32.totalorder %s159, %s173
    %p175 = scmp.eq.s32.totalorder %s21, 0
    %p176 = por %p174, %p175
    %s178 = sadd.s32 %s177, 1
    %p181 = scmp.eq.s32.totalorder %s15, 3
    %p182 = scmp.ne.s32.totalorder %s177, %s179
    %p183 = scmp.eq.s32.totalorder %s15, 0
    %p184 = por %p182, %p183
    %p185 = scmp.ne.s32.totalorder %s177, %s179
    %p186 = scmp.eq.s32.totalorder %s20, 3
    %p187 = por %p185, %p186
    %p188 = scmp.ne.s32.totalorder %s179, %s180
    %p189 = scmp.eq.s32.totalorder %s20, 0
    %p190 = por %p188, %p189
    %p191 = scmp.ne.s32.totalorder %s179, %s180
    %p192 = scmp.eq.s32.totalorder %s21, 3
    %p193 = por %p191, %p192
    %p195 = scmp.ne.s32.totalorder %s180, %s194
    %p196 = scmp.eq.s32.totalorder %s21, 0
    %p197 = por %p195, %p196
    %s199 = sadd.s32 %s198, 1
    %p202 = scmp.eq.s32.totalorder %s15, 3
    %p203 = scmp.ne.s32.totalorder %s198, %s200
    %p204 = scmp.eq.s32.totalorder %s15, 0
    %p205 = por %p203, %p204
    %p206 = scmp.ne.s32.totalorder %s198, %s200
    %p207 = scmp.eq.s32.totalorder %s20, 3
    %p208 = por %p206, %p207
    %p209 = scmp.ne.s32.totalorder %s200, %s201
    %p210 = scmp.eq.s32.totalorder %s20, 0
    %p211 = por %p209, %p210
    %p212 = scmp.ne.s32.totalorder %s200, %s201
    %p213 = scmp.eq.s32.totalorder %s21, 3
    %p214 = por %p212, %p213
    %p216 = scmp.ne.s32.totalorder %s201, %s215
    %p217 = scmp.eq.s32.totalorder %s21, 0
    %p218 = por %p216, %p217
    %s220 = sadd.s32 %s219, 1
    %p223 = scmp.eq.s32.totalorder %s15, 3
    %p224 = scmp.ne.s32.totalorder %s219, %s221
    %p225 = scmp.eq.s32.totalorder %s15, 0
    %p226 = por %p224, %p225
    %p227 = scmp.ne.s32.totalorder %s219, %s221
    %p228 = scmp.eq.s32.totalorder %s20, 3
    %p229 = por %p227, %p228
    %p230 = scmp.ne.s32.totalorder %s221, %s222
    %p231 = scmp.eq.s32.totalorder %s20, 0
    %p232 = por %p230, %p231
    %p233 = scmp.ne.s32.totalorder %s221, %s222
    %p234 = scmp.eq.s32.totalorder %s21, 3
    %p235 = por %p233, %p234
    %p237 = scmp.ne.s32.totalorder %s222, %s236
    %p238 = scmp.eq.s32.totalorder %s21, 0
    %p239 = por %p237, %p238
    %s240 = ssub.s32 %s22, %s41
    %p241 = scmp.eq.s32.totalorder %s240, 0
    %s243 = sadd.s32 %s242, 1
    %s244 = scalar_select %p241, %s242, %s243
    %p247 = pneg %p241
    %p248 = scmp.eq.s32.totalorder %s15, 3
    %p249 = por %p247, %p248
    %p250 = scmp.ne.s32.totalorder %s242, %s245
    %p251 = scmp.eq.s32.totalorder %s15, 0
    %p252 = por %p250, %p251
    %p253 = scmp.ne.s32.totalorder %s242, %s245
    %p254 = scmp.eq.s32.totalorder %s20, 3
    %p255 = por %p253, %p254
    %p256 = scmp.ne.s32.totalorder %s245, %s246
    %p257 = scmp.eq.s32.totalorder %s20, 0
    %p258 = por %p256, %p257
    %p259 = scmp.ne.s32.totalorder %s245, %s246
    %p260 = scmp.eq.s32.totalorder %s21, 3
    %p261 = por %p259, %p260
    %p263 = scmp.ne.s32.totalorder %s246, %s262
    %p264 = scmp.eq.s32.totalorder %s21, 0
    %p265 = por %p263, %p264
    %p266 = scmp.le.s32.totalorder 1, %s15
    %p267 = scmp.lt.s32.totalorder %s15, 5
    %p268 = pnand %p266, %p267
    %p269 = pneg %p268
    // Predicated region
    $region9: #{tpu_custom_call.1} parent=5 // pred_check
      _
    $region10: #{tpu_custom_call.1} parent=5 // pred_check_branch
      %271 = sbr.rel (%p268) target = $region12
    $region11: #{tpu_custom_call.1} parent=5 // pred_region
      %s272 = ssub.s32 %s15, 1
      // Predicated region
      $region13: #{tpu_custom_call.1} parent=11 // pred_check
        %p273 = pneg %p85
      $region14: #{tpu_custom_call.1} parent=11 // pred_check_branch
        %275 = sbr.rel (%p273) target = $region16
      $region15: #{tpu_custom_call.1} parent=11 // pred_region
        _
      $region16: #{tpu_custom_call.1} parent=11 // pred_fallthru
        _
      // Predicated region
      $region17: #{tpu_custom_call.1} parent=11 // pred_check
        %p276 = pneg %p106
      $region18: #{tpu_custom_call.1} parent=11 // pred_check_branch
        %278 = sbr.rel (%p276) target = $region20
      $region19: #{tpu_custom_call.1} parent=11 // pred_region
        _
      $region20: #{tpu_custom_call.1} parent=11 // pred_fallthru
        _
      // Predicated region
      $region21: #{tpu_custom_call.1} parent=11 // pred_check
        %p279 = pneg %p127
      $region22: #{tpu_custom_call.1} parent=11 // pred_check_branch
        %281 = sbr.rel (%p279) target = $region24
      $region23: #{tpu_custom_call.1} parent=11 // pred_region
        _
      $region24: #{tpu_custom_call.1} parent=11 // pred_fallthru
        _
      // Predicated region
      $region25: #{tpu_custom_call.1} parent=11 // pred_check
        %p282 = pneg %p148
      $region26: #{tpu_custom_call.1} parent=11 // pred_check_branch
        %284 = sbr.rel (%p282) target = $region28
      $region27: #{tpu_custom_call.1} parent=11 // pred_region
        _
      $region28: #{tpu_custom_call.1} parent=11 // pred_fallthru
        _
      // Predicated region
      $region29: #{tpu_custom_call.1} parent=11 // pred_check
        %p285 = pneg %p169
      $region30: #{tpu_custom_call.1} parent=11 // pred_check_branch
        %287 = sbr.rel (%p285) target = $region32
      $region31: #{tpu_custom_call.1} parent=11 // pred_region
        _
      $region32: #{tpu_custom_call.1} parent=11 // pred_fallthru
        _
      // Predicated region
      $region33: #{tpu_custom_call.1} parent=11 // pred_check
        %p288 = pneg %p190
      $region34: #{tpu_custom_call.1} parent=11 // pred_check_branch
        %290 = sbr.rel (%p288) target = $region36
      $region35: #{tpu_custom_call.1} parent=11 // pred_region
        _
      $region36: #{tpu_custom_call.1} parent=11 // pred_fallthru
        _
      // Predicated region
      $region37: #{tpu_custom_call.1} parent=11 // pred_check
        %p291 = pneg %p211
      $region38: #{tpu_custom_call.1} parent=11 // pred_check_branch
        %293 = sbr.rel (%p291) target = $region40
      $region39: #{tpu_custom_call.1} parent=11 // pred_region
        _
      $region40: #{tpu_custom_call.1} parent=11 // pred_fallthru
        _
      // Predicated region
      $region41: #{tpu_custom_call.1} parent=11 // pred_check
        %p294 = pneg %p232
      $region42: #{tpu_custom_call.1} parent=11 // pred_check_branch
        %296 = sbr.rel (%p294) target = $region44
      $region43: #{tpu_custom_call.1} parent=11 // pred_region
        _
      $region44: #{tpu_custom_call.1} parent=11 // pred_fallthru
        _
    $region12: #{tpu_custom_call.1} parent=5 // pred_fallthru
      _
    %p297 = scmp.lt.s32.totalorder %s15, 4
    // Predicated region
    $region45: #{tpu_custom_call.1} parent=5 // pred_check
      %p298 = pneg %p297
    $region46: #{tpu_custom_call.1} parent=5 // pred_check_branch
      %300 = sbr.rel (%p298) target = $region48
    $region47: #{tpu_custom_call.1} parent=5 // pred_region
      // Predicated region
      $region49: #{tpu_custom_call.1} parent=47 // pred_check
        %p301 = pneg %p58
      $region50: #{tpu_custom_call.1} parent=47 // pred_check_branch
        %303 = sbr.rel (%p301) target = $region52
      $region51: #{tpu_custom_call.1} parent=47 // pred_region
        %s304 = sadd.s32 %s22, %s23
        %s305 = smul.u32 16, %s24
        %p306 = scmp.lt.s32.totalorder %s304, 1
        %s307 = scalar_select %p306, %s304, 1
        %p308 = scmp.lt.s32.totalorder %s305, 31
        %s309 = scalar_select %p308, %s305, 31
        %s310 = smul.addr %s307, 32
        %s311 = sadd.s32 %s309, %s310
        %s312 = smul.addr %s311, 8
        %s313 = scalar_lea.vmem %s0, %s312
        %s314 = sadd.s32 %s22, %s23
        %s315 = smul.u32 16, %s24
      $region52: #{tpu_custom_call.1} parent=47 // pred_fallthru
        _
    $region48: #{tpu_custom_call.1} parent=5 // pred_fallthru
      _
    %p316 = scmp.le.s32.totalorder 1, %s15
    %p317 = scmp.lt.s32.totalorder %s15, 5
    %p318 = pnand %p316, %p317
    %p319 = pneg %p318
    // Predicated region
    $region53: #{tpu_custom_call.1} parent=5 // pred_check
      _
    $region54: #{tpu_custom_call.1} parent=5 // pred_check_branch
      %321 = sbr.rel (%p318) target = $region56
    $region55: #{tpu_custom_call.1} parent=5 // pred_region
      %s322 = ssub.s32 %s15, 1
      %s323 = sadd.s32 %s25, %s26
      %s324 = smul.u32 16, %s27
      %p325 = scmp.lt.s32.totalorder %s323, 1
      %s326 = scalar_select %p325, %s323, 1
      %p327 = scmp.lt.s32.totalorder %s324, 31
      %s328 = scalar_select %p327, %s324, 31
      %s329 = smul.addr %s326, 32
      %s330 = sadd.s32 %s328, %s329
      %s331 = smul.addr %s330, 8
      %s332 = scalar_lea.vmem %s0, %s331
      %p333 = pneg %p64
      %p334 = pneg %p61
      %p335 = pneg %p85
      %p336 = pneg %p82
      %p337 = pneg %p106
      %p338 = pneg %p103
      %p339 = pneg %p127
      %p340 = pneg %p124
      %p341 = pneg %p148
      %p342 = pneg %p145
      %p343 = pneg %p169
      %p344 = pneg %p166
      %p345 = pneg %p190
      %p346 = pneg %p187
      %p347 = pneg %p211
      %p348 = pneg %p208
      %p349 = pneg %p232
      %p350 = pneg %p229
      %p351 = pneg %p258
      %p352 = pneg %p255
      %p353 = scmp.lt.s32.totalorder %s25, 1
      %s354 = scalar_select %p353, %s25, 1
      %s355 = smul.addr %s354, 2
      %s356 = smul.addr %s355, 8
      %s357 = scalar_lea.vmem %s9, %s356
      %s358 = sadd.s32 %s25, %s26
      %s359 = smul.u32 16, %s27
      %p360 = scmp.lt.s32.totalorder %s358, 1
      %s361 = scalar_select %p360, %s358, 1
      %p362 = scmp.lt.s32.totalorder %s359, 31
      %s363 = scalar_select %p362, %s359, 31
      %s364 = smul.addr %s361, 32
      %s365 = sadd.s32 %s363, %s364
      %s366 = smul.addr %s365, 8
      %s367 = scalar_lea.vmem %s0, %s366
      %s368 = sadd.s32 %s25, %s26
      %s369 = smul.u32 16, %s27
      %p370 = scmp.lt.s32.totalorder %s25, 1
      %s371 = scalar_select %p370, %s25, 1
      %s372 = smul.addr %s371, 2
      %s373 = smul.addr %s372, 8
      %s374 = scalar_lea.vmem %s9, %s373
      %p376 = scmp.eq.s32.totalorder %s26, 0
      %p377 = scmp.eq.s32.totalorder %s27, 0
      %p378 = pnand %p376, %p377
      %p379 = pneg %p378
      // Predicated region
      $region57: #{tpu_custom_call.1} parent=55 // pred_check
        _
      $region58: #{tpu_custom_call.1} parent=55 // pred_check_branch
        %381 = sbr.rel (%p378) target = $region60
      $region59: #{tpu_custom_call.1} parent=55 // pred_region
        %vm382 = vcmask 64512
        %383 = vst.msk [vmem:[%s374] sm:$0xff] %vm382, 0.0
        %vm384 = vcmask 57344
        %385 = vst.msk [vmem:[%s374 + $0x8] sm:$0x1] %vm384, 0.0
      $region60: #{tpu_custom_call.1} parent=55 // pred_fallthru
        _
      // Predicated region
      $region61: #{tpu_custom_call.1} parent=55 // pred_check
        %p386 = pneg %p377
      $region62: #{tpu_custom_call.1} parent=55 // pred_check_branch
        %388 = sbr.rel (%p386) target = $region64
      $region63: #{tpu_custom_call.1} parent=55 // pred_region
        %vm389 = vcmask 64512
        %390 = vst.msk [vmem:[#allocation2] sm:$0xff] %vm389, 0.0
      $region64: #{tpu_custom_call.1} parent=55 // pred_fallthru
        _
      %v391 = vld [vmem:[%s367] sm:$0xff]
      %v392 = vld [vmem:[%s367 + $0x8] sm:$0xff]
      %v393 = vld [vmem:[%s367 + $0x10] sm:$0xff]
      %v394 = vld [vmem:[%s367 + $0x18] sm:$0xff]
      %v395 = vld [vmem:[%s367 + $0x20] sm:$0xff]
      %v396 = vld [vmem:[%s367 + $0x28] sm:$0xff]
      %v397 = vld [vmem:[%s367 + $0x30] sm:$0xff]
      %v398 = vld [vmem:[%s367 + $0x38] sm:$0xff]
      %v399 = vld [vmem:[%s367 + $0x40] sm:$0xff]
      %v400 = vld [vmem:[%s367 + $0x48] sm:$0xff]
      %v401 = vld [vmem:[%s367 + $0x50] sm:$0xff]
      %v402 = vld [vmem:[%s367 + $0x58] sm:$0xff]
      %v403 = vld [vmem:[%s367 + $0x60] sm:$0xff]
      %v404 = vld [vmem:[%s367 + $0x68] sm:$0xff]
      %v405 = vld [vmem:[%s367 + $0x70] sm:$0xff]
      %v406 = vld [vmem:[%s367 + $0x78] sm:$0xff]
      %v407 = vpack.c.bf16 %v392, %v391
      %v408 = vpack.c.bf16 %v394, %v393
      %v409 = vpack.c.bf16 %v396, %v395
      %v410 = vpack.c.bf16 %v398, %v397
      %v411 = vpack.c.bf16 %v400, %v399
      %v412 = vpack.c.bf16 %v402, %v401
      %v413 = vpack.c.bf16 %v404, %v403
      %v414 = vpack.c.bf16 %v406, %v405
      %v415 = vld [vmem:[#allocation2] sm:$0xff]
      %416 = vxpose.xlu0.c.b16.start [1/8] %v407, 128
      %417 = vxpose.xlu0.c.b16.cont [2/8] %v408, 128
      %418 = vxpose.xlu0.c.b16.cont [3/8] %v409, 128
      %419 = vxpose.xlu0.c.b16.cont [4/8] %v410, 128
      %420 = vxpose.xlu0.c.b16.cont [5/8] %v411, 128
      %421 = vxpose.xlu0.c.b16.cont [6/8] %v412, 128
      %422 = vxpose.xlu0.c.b16.cont [7/8] %v413, 128
      %423 = vxpose.xlu0.c.b16.end [8/8] %v414, 128
      %v424 = vpop.trf.xlu0
      %v425 = vpop.trf.xlu0
      %v426 = vpop.trf.xlu0
      %v427 = vpop.trf.xlu0
      %v428 = vpop.trf.xlu0
      %v429 = vpop.trf.xlu0
      %v430 = vpop.trf.xlu0
      %v431 = vpop.trf.xlu0
      %432 = vmatprep.subr.bf16.mxu0 0
      %433 = vmatpush1.bf16.msra.mxu0 %v407
      %434 = vmatprep.subr.bf16.mxu0 0
      %435 = vmatpush1.bf16.msra.mxu0 %v408
      %436 = vmatprep.subr.bf16.mxu0 0
      %437 = vmatpush1.bf16.msra.mxu0 %v409
      %438 = vmatprep.subr.bf16.mxu0 0
      %439 = vmatpush1.bf16.msra.mxu0 %v410
      %440 = vmatprep.subr.bf16.mxu0 0
      %441 = vmatpush1.bf16.msra.mxu0 %v411
      %442 = vmatprep.subr.bf16.mxu0 0
      %443 = vmatpush1.bf16.msra.mxu0 %v412
      %444 = vmatprep.subr.bf16.mxu0 0
      %445 = vmatpush1.bf16.msra.mxu0 %v413
      %446 = vmatprep.subr.bf16.mxu0 0
      %447 = vmatpush1.bf16.msra.mxu0 %v414
      %448 = vmatprep.subr.bf16.mxu0 0
      %449 = vmatpush1.bf16.msra.mxu0 0
      %450 = vmatprep.subr.bf16.mxu0 0
      %451 = vmatpush1.bf16.msra.mxu0 0
      %452 = vmatprep.subr.bf16.mxu0 0
      %453 = vmatpush1.bf16.msra.mxu0 0
      %454 = vmatprep.subr.bf16.mxu0 0
      %455 = vmatpush1.bf16.msra.mxu0 0
      %456 = vmatprep.subr.bf16.mxu0 0
      %457 = vmatpush1.bf16.msra.mxu0 0
      %458 = vmatprep.subr.bf16.mxu0 0
      %459 = vmatpush1.bf16.msra.mxu0 0
      %460 = vmatprep.subr.bf16.mxu0 0
      %461 = vmatpush1.bf16.msra.mxu0 0
      %462 = vmatprep.subr.bf16.mxu0 0
      %463 = vmatpush1.bf16.msra.mxu0 0
      %464 = vmatprep.mubr.bf16.mxu0 0
      %465 = vmatmul.mubr.bf16.gmra.mrb[0].mxu0 %v424
      %v466 = vpop.f32.mrb[0].mxu0
      %v467 = vadd.f32 0.0, %v466
      %v468 = vpop.f32.mrb[0].mxu0
      %v469 = vpop.f32.mrb[0].mxu0
      %v470 = vpop.f32.mrb[0].mxu0
      %471 = vdwg.mxu0
      %v472 = vadd.f32 %v415, %v467
      %vm473 = vcmask 64512
      %474 = vst.msk [vmem:[#allocation2] sm:$0xff] %vm473, %v472
      %p475 = scmp.eq.s32.totalorder %s27, 1
      // Predicated region
      $region65: #{tpu_custom_call.1} parent=55 // pred_check
        %p476 = pneg %p475
      $region66: #{tpu_custom_call.1} parent=55 // pred_check_branch
        %478 = sbr.rel (%p476) target = $region68
      $region67: #{tpu_custom_call.1} parent=55 // pred_region
        %v479 = vld [vmem:[#allocation2] sm:$0xff]
        %v480 = vld [vmem:[%s2] sm:$0xff]
        %v482 = vsel %vm473, %v480, 0
        %484 = vmatprep.subr.mxu0 0.0
        %485 = vmatpush1.msra.mxu0 %v479
        %486 = vmatprep.subr.mxu0 0.0
        %487 = vmatpush1.msra.mxu0 0.0
        %488 = vmatprep.subr.mxu0 0.0
        %489 = vmatpush1.msra.mxu0 0.0
        %490 = vmatprep.subr.mxu0 0.0
        %491 = vmatpush1.msra.mxu0 0.0
        %492 = vmatprep.subr.mxu0 0.0
        %493 = vmatpush1.msra.mxu0 0.0
        %494 = vmatprep.subr.mxu0 0.0
        %495 = vmatpush1.msra.mxu0 0.0
        %496 = vmatprep.subr.mxu0 0.0
        %497 = vmatpush1.msra.mxu0 0.0
        %498 = vmatprep.subr.mxu0 0.0
        %499 = vmatpush1.msra.mxu0 0.0
        %500 = vmatprep.subr.mxu0 0.0
        %501 = vmatpush1.msra.mxu0 0.0
        %502 = vmatprep.subr.mxu0 0.0
        %503 = vmatpush1.msra.mxu0 0.0
        %504 = vmatprep.subr.mxu0 0.0
        %505 = vmatpush1.msra.mxu0 0.0
        %506 = vmatprep.subr.mxu0 0.0
        %507 = vmatpush1.msra.mxu0 0.0
        %508 = vmatprep.subr.mxu0 0.0
        %509 = vmatpush1.msra.mxu0 0.0
        %510 = vmatprep.subr.mxu0 0.0
        %511 = vmatpush1.msra.mxu0 0.0
        %512 = vmatprep.subr.mxu0 0.0
        %513 = vmatpush1.msra.mxu0 0.0
        %514 = vmatprep.subr.mxu0 0.0
        %515 = vmatpush1.msra.mxu0 0.0
        %516 = vmatprep.subr.mxu0 0.0
        %517 = vmatpush1.msra.mxu0 0.0
        %518 = vmatprep.subr.mxu0 0.0
        %519 = vmatpush1.msra.mxu0 0.0
        %520 = vmatprep.subr.mxu0 0.0
        %521 = vmatpush1.msra.mxu0 0.0
        %522 = vmatprep.subr.mxu0 0.0
        %523 = vmatpush1.msra.mxu0 0.0
        %524 = vmatprep.subr.mxu0 0.0
        %525 = vmatpush1.msra.mxu0 0.0
        %526 = vmatprep.subr.mxu0 0.0
        %527 = vmatpush1.msra.mxu0 0.0
        %528 = vmatprep.subr.mxu0 0.0
        %529 = vmatpush1.msra.mxu0 0.0
        %530 = vmatprep.subr.mxu0 0.0
        %531 = vmatpush1.msra.mxu0 0.0
        %532 = vmatprep.subr.mxu0 0.0
        %533 = vmatpush1.msra.mxu0 0.0
        %534 = vmatprep.subr.mxu0 0.0
        %535 = vmatpush1.msra.mxu0 0.0
        %536 = vmatprep.subr.mxu0 0.0
        %537 = vmatpush1.msra.mxu0 0.0
        %538 = vmatprep.subr.mxu0 0.0
        %539 = vmatpush1.msra.mxu0 0.0
        %540 = vmatprep.subr.mxu0 0.0
        %541 = vmatpush1.msra.mxu0 0.0
        %542 = vmatprep.subr.mxu0 0.0
        %543 = vmatpush1.msra.mxu0 0.0
        %544 = vmatprep.subr.mxu0 0.0
        %545 = vmatpush1.msra.mxu0 0.0
        %546 = vmatprep.subr.mxu0 0.0
        %547 = vmatpush1.msra.mxu0 0.0
        %548 = vmatprep.mubr.f32.mxu0 0.0
        %549 = vmatmul.mubr.f32.gmra.mrb[0].mxu0 %v482
        %v550 = vpop.f32.mrb[0].mxu0
        %v551 = vadd.f32 0.0, %v550
        %v552 = vpop.f32.mrb[0].mxu0
        %553 = vdwg.mxu0
        %v554 = vld [vmem:[%s1] sm:$0xff]
        %v556 = vsel %vm473, %v551, 0
        %v559 = vsel %vm473, %v554, 0
        %561 = vmatprep.subr.mxu0 0.0
        %562 = vmatpush1.xpose.msra.mxu0 %v559
        %563 = vmatprep.subr.mxu0 0.0
        %564 = vmatpush1.xpose.msra.mxu0 0.0
        %565 = vmatprep.subr.mxu0 0.0
        %566 = vmatpush1.xpose.msra.mxu0 0.0
        %567 = vmatprep.subr.mxu0 0.0
        %568 = vmatpush1.xpose.msra.mxu0 0.0
        %569 = vmatprep.subr.mxu0 0.0
        %570 = vmatpush1.xpose.msra.mxu0 0.0
        %571 = vmatprep.subr.mxu0 0.0
        %572 = vmatpush1.xpose.msra.mxu0 0.0
        %573 = vmatprep.subr.mxu0 0.0
        %574 = vmatpush1.xpose.msra.mxu0 0.0
        %575 = vmatprep.subr.mxu0 0.0
        %576 = vmatpush1.xpose.msra.mxu0 0.0
        %577 = vmatprep.subr.mxu0 0.0
        %578 = vmatpush1.xpose.msra.mxu0 0.0
        %579 = vmatprep.subr.mxu0 0.0
        %580 = vmatpush1.xpose.msra.mxu0 0.0
        %581 = vmatprep.subr.mxu0 0.0
        %582 = vmatpush1.xpose.msra.mxu0 0.0
        %583 = vmatprep.subr.mxu0 0.0
        %584 = vmatpush1.xpose.msra.mxu0 0.0
        %585 = vmatprep.subr.mxu0 0.0
        %586 = vmatpush1.xpose.msra.mxu0 0.0
        %587 = vmatprep.subr.mxu0 0.0
        %588 = vmatpush1.xpose.msra.mxu0 0.0
        %589 = vmatprep.subr.mxu0 0.0
        %590 = vmatpush1.xpose.msra.mxu0 0.0
        %591 = vmatprep.subr.mxu0 0.0
        %592 = vmatpush1.xpose.msra.mxu0 0.0
        %593 = vmatprep.subr.mxu0 0.0
        %594 = vmatpush1.xpose.msra.mxu0 0.0
        %595 = vmatprep.subr.mxu0 0.0
        %596 = vmatpush1.xpose.msra.mxu0 0.0
        %597 = vmatprep.subr.mxu0 0.0
        %598 = vmatpush1.xpose.msra.mxu0 0.0
        %599 = vmatprep.subr.mxu0 0.0
        %600 = vmatpush1.xpose.msra.mxu0 0.0
        %601 = vmatprep.subr.mxu0 0.0
        %602 = vmatpush1.xpose.msra.mxu0 0.0
        %603 = vmatprep.subr.mxu0 0.0
        %604 = vmatpush1.xpose.msra.mxu0 0.0
        %605 = vmatprep.subr.mxu0 0.0
        %606 = vmatpush1.xpose.msra.mxu0 0.0
        %607 = vmatprep.subr.mxu0 0.0
        %608 = vmatpush1.xpose.msra.mxu0 0.0
        %609 = vmatprep.subr.mxu0 0.0
        %610 = vmatpush1.xpose.msra.mxu0 0.0
        %611 = vmatprep.subr.mxu0 0.0
        %612 = vmatpush1.xpose.msra.mxu0 0.0
        %613 = vmatprep.subr.mxu0 0.0
        %614 = vmatpush1.xpose.msra.mxu0 0.0
        %615 = vmatprep.subr.mxu0 0.0
        %616 = vmatpush1.xpose.msra.mxu0 0.0
        %617 = vmatprep.subr.mxu0 0.0
        %618 = vmatpush1.xpose.msra.mxu0 0.0
        %619 = vmatprep.subr.mxu0 0.0
        %620 = vmatpush1.xpose.msra.mxu0 0.0
        %621 = vmatprep.subr.mxu0 0.0
        %622 = vmatpush1.xpose.msra.mxu0 0.0
        %623 = vmatprep.subr.mxu0 0.0
        %624 = vmatpush1.xpose.msra.mxu0 0.0
        %625 = vmatprep.mubr.f32.mxu0 0.0
        %626 = vmatmul.mubr.f32.gmra.mrb[0].mxu0 %v556
        %v627 = vpop.f32.mrb[0].mxu0
        %v628 = vadd.f32 0.0, %v627
        %v629 = vpop.f32.mrb[0].mxu0
        %630 = vdwg.mxu0
        %v631 = vmul.f32 %v628, 0.5
        %v632 = vsel %vm473, %v631, -inf
        %633 = vmax.xlane.f32.xlu0 %v632
        %v634 = vpop.xlane.xlu0 %633
        %v635 = vsub.f32 %v631, %v634
        %v636 = vmul.f32 %v635, 1.442695
        %v637 = vpow.pop %v636
        %v638 = vsel %vm473, %v637, 0.0
        %639 = vadd.xlane.f32.xlu0 %v638
        %v640 = vpop.xlane.xlu0 %639
        %v641 = vrcp.pop %v640
        %v642 = vmul.f32 %v637, %v641
        %v643 = vld [vmem:[%s3] sm:$0x3]
        %v644 = vld [vmem:[%s4] sm:$0x3]
        %646 = vset.pattern.permute.xlu0 0
        %647 = vperm.xlu0 %646, %v644
        %v648 = vpop.permute.xlu0 %647
        %v651 = vsel %vm473, %v643, 0
        %653 = vmatprep.subr.mxu0 0.0
        %654 = vmatpush1.msra.mxu0 %v642
        %655 = vmatprep.subr.mxu0 0.0
        %656 = vmatpush1.msra.mxu0 0.0
        %657 = vmatprep.subr.mxu0 0.0
        %658 = vmatpush1.msra.mxu0 0.0
        %659 = vmatprep.subr.mxu0 0.0
        %660 = vmatpush1.msra.mxu0 0.0
        %661 = vmatprep.subr.mxu0 0.0
        %662 = vmatpush1.msra.mxu0 0.0
        %663 = vmatprep.subr.mxu0 0.0
        %664 = vmatpush1.msra.mxu0 0.0
        %665 = vmatprep.subr.mxu0 0.0
        %666 = vmatpush1.msra.mxu0 0.0
        %667 = vmatprep.subr.mxu0 0.0
        %668 = vmatpush1.msra.mxu0 0.0
        %669 = vmatprep.subr.mxu0 0.0
        %670 = vmatpush1.msra.mxu0 0.0
        %671 = vmatprep.subr.mxu0 0.0
        %672 = vmatpush1.msra.mxu0 0.0
        %673 = vmatprep.subr.mxu0 0.0
        %674 = vmatpush1.msra.mxu0 0.0
        %675 = vmatprep.subr.mxu0 0.0
        %676 = vmatpush1.msra.mxu0 0.0
        %677 = vmatprep.subr.mxu0 0.0
        %678 = vmatpush1.msra.mxu0 0.0
        %679 = vmatprep.subr.mxu0 0.0
        %680 = vmatpush1.msra.mxu0 0.0
        %681 = vmatprep.subr.mxu0 0.0
        %682 = vmatpush1.msra.mxu0 0.0
        %683 = vmatprep.subr.mxu0 0.0
        %684 = vmatpush1.msra.mxu0 0.0
        %685 = vmatprep.subr.mxu0 0.0
        %686 = vmatpush1.msra.mxu0 0.0
        %687 = vmatprep.subr.mxu0 0.0
        %688 = vmatpush1.msra.mxu0 0.0
        %689 = vmatprep.subr.mxu0 0.0
        %690 = vmatpush1.msra.mxu0 0.0
        %691 = vmatprep.subr.mxu0 0.0
        %692 = vmatpush1.msra.mxu0 0.0
        %693 = vmatprep.subr.mxu0 0.0
        %694 = vmatpush1.msra.mxu0 0.0
        %695 = vmatprep.subr.mxu0 0.0
        %696 = vmatpush1.msra.mxu0 0.0
        %697 = vmatprep.subr.mxu0 0.0
        %698 = vmatpush1.msra.mxu0 0.0
        %699 = vmatprep.subr.mxu0 0.0
        %700 = vmatpush1.msra.mxu0 0.0
        %701 = vmatprep.subr.mxu0 0.0
        %702 = vmatpush1.msra.mxu0 0.0
        %703 = vmatprep.subr.mxu0 0.0
        %704 = vmatpush1.msra.mxu0 0.0
        %705 = vmatprep.subr.mxu0 0.0
        %706 = vmatpush1.msra.mxu0 0.0
        %707 = vmatprep.subr.mxu0 0.0
        %708 = vmatpush1.msra.mxu0 0.0
        %709 = vmatprep.subr.mxu0 0.0
        %710 = vmatpush1.msra.mxu0 0.0
        %711 = vmatprep.subr.mxu0 0.0
        %712 = vmatpush1.msra.mxu0 0.0
        %713 = vmatprep.subr.mxu0 0.0
        %714 = vmatpush1.msra.mxu0 0.0
        %715 = vmatprep.subr.mxu0 0.0
        %716 = vmatpush1.msra.mxu0 0.0
        %717 = vmatprep.mubr.f32.mxu0 0.0
        %718 = vmatmul.mubr.f32.gmra.mrb[0].mxu0 %v651
        %v719 = vpop.f32.mrb[0].mxu0
        %v720 = vadd.f32 %v648, %v719
        %v721 = vpop.f32.mrb[0].mxu0
        %722 = vdwg.mxu0
        %vm723 = vcmask 58368
        %v724 = vsel %vm723, %v720, 0.0
        %725 = vadd.xlane.f32.xlu0 %v724
        %v726 = vpop.xlane.xlu0 %725
        %v727 = vrot.slane %v726, 4
        %v728 = vadd.f32 %v726, %v727
        %v729 = vrot.slane %v728, 2
        %v730 = vadd.f32 %v728, %v729
        %v731 = vrot.slane %v730, 1
        %v732 = vadd.f32 %v730, %v731
        %s733 = vtos %v732
        %v734 = vrcp.pop 16.0
        %s735 = vtos %v734
        %s736 = smul.f32 %s733, %s735
        %v737 = vstv %s736
        %v738 = vsub.f32 %v720, %v737
        %v739 = vmul.f32 %v738, %v738
        %v740 = vsel %vm723, %v739, 0.0
        %741 = vadd.xlane.f32.xlu0 %v740
        %v742 = vpop.xlane.xlu0 %741
        %v743 = vrot.slane %v742, 4
        %v744 = vadd.f32 %v742, %v743
        %v745 = vrot.slane %v744, 2
        %v746 = vadd.f32 %v744, %v745
        %v747 = vrot.slane %v746, 1
        %v748 = vadd.f32 %v746, %v747
        %s749 = vtos %v748
        %v750 = vrcp.pop 16.0
        %s751 = vtos %v750
        %s752 = smul.f32 %s749, %s751
        %s753 = sadd.f32 %s752, 1e-05
        %v754 = vstv %s753
        %v755 = vrsqrt.pop %v754
        %s756 = vtos %v755
        %v757 = vstv %s756
        %v758 = vmul.f32 %v738, %v757
        %v759 = vld [vmem:[%s5] sm:$0x3]
        %v760 = vmul.f32 %v758, %v759
        %v761 = vld [vmem:[%s6] sm:$0x3]
        %v762 = vadd.f32 %v760, %v761
        %v763 = vmax.f32 %v762, 0.0
        %v764 = vld [vmem:[%s7] sm:$0xff]
        %v765 = vld [vmem:[%s7 + $0x8] sm:$0x1]
        %v766 = vld [vmem:[%s8] sm:$0xff]
        %v767 = vld [vmem:[%s8 + $0x8] sm:$0x1]
        %769 = vset.pattern.permute.xlu0 0
        %770 = vperm.xlu0 %769, %v766
        %v771 = vpop.permute.xlu0 %770
        %774 = vset.pattern.permute.xlu0 0
        %775 = vperm.xlu0 %774, %v767
        %v776 = vpop.permute.xlu0 %775
        %vm778 = vcmask 15360
        %v780 = vsel %vm778, %v764, 0
        %v783 = vsel %vm778, %v765, 0
        %vm785 = vcmask 1041408
        %v787 = vsel %vm785, %v763, 0
        %789 = vmatprep.subr.mxu0 0.0
        %790 = vmatpush1.msra.mxu0 %v787
        %791 = vmatprep.subr.mxu0 0.0
        %792 = vmatpush1.msra.mxu0 0.0
        %793 = vmatprep.subr.mxu0 0.0
        %794 = vmatpush1.msra.mxu0 0.0
        %795 = vmatprep.subr.mxu0 0.0
        %796 = vmatpush1.msra.mxu0 0.0
        %797 = vmatprep.subr.mxu0 0.0
        %798 = vmatpush1.msra.mxu0 0.0
        %799 = vmatprep.subr.mxu0 0.0
        %800 = vmatpush1.msra.mxu0 0.0
        %801 = vmatprep.subr.mxu0 0.0
        %802 = vmatpush1.msra.mxu0 0.0
        %803 = vmatprep.subr.mxu0 0.0
        %804 = vmatpush1.msra.mxu0 0.0
        %805 = vmatprep.subr.mxu0 0.0
        %806 = vmatpush1.msra.mxu0 0.0
        %807 = vmatprep.subr.mxu0 0.0
        %808 = vmatpush1.msra.mxu0 0.0
        %809 = vmatprep.subr.mxu0 0.0
        %810 = vmatpush1.msra.mxu0 0.0
        %811 = vmatprep.subr.mxu0 0.0
        %812 = vmatpush1.msra.mxu0 0.0
        %813 = vmatprep.subr.mxu0 0.0
        %814 = vmatpush1.msra.mxu0 0.0
        %815 = vmatprep.subr.mxu0 0.0
        %816 = vmatpush1.msra.mxu0 0.0
        %817 = vmatprep.subr.mxu0 0.0
        %818 = vmatpush1.msra.mxu0 0.0
        %819 = vmatprep.subr.mxu0 0.0
        %820 = vmatpush1.msra.mxu0 0.0
        %821 = vmatprep.subr.mxu0 0.0
        %822 = vmatpush1.msra.mxu0 0.0
        %823 = vmatprep.subr.mxu0 0.0
        %824 = vmatpush1.msra.mxu0 0.0
        %825 = vmatprep.subr.mxu0 0.0
        %826 = vmatpush1.msra.mxu0 0.0
        %827 = vmatprep.subr.mxu0 0.0
        %828 = vmatpush1.msra.mxu0 0.0
        %829 = vmatprep.subr.mxu0 0.0
        %830 = vmatpush1.msra.mxu0 0.0
        %831 = vmatprep.subr.mxu0 0.0
        %832 = vmatpush1.msra.mxu0 0.0
        %833 = vmatprep.subr.mxu0 0.0
        %834 = vmatpush1.msra.mxu0 0.0
        %835 = vmatprep.subr.mxu0 0.0
        %836 = vmatpush1.msra.mxu0 0.0
        %837 = vmatprep.subr.mxu0 0.0
        %838 = vmatpush1.msra.mxu0 0.0
        %839 = vmatprep.subr.mxu0 0.0
        %840 = vmatpush1.msra.mxu0 0.0
        %841 = vmatprep.subr.mxu0 0.0
        %842 = vmatpush1.msra.mxu0 0.0
        %843 = vmatprep.subr.mxu0 0.0
        %844 = vmatpush1.msra.mxu0 0.0
        %845 = vmatprep.subr.mxu0 0.0
        %846 = vmatpush1.msra.mxu0 0.0
        %847 = vmatprep.subr.mxu0 0.0
        %848 = vmatpush1.msra.mxu0 0.0
        %849 = vmatprep.subr.mxu0 0.0
        %850 = vmatpush1.msra.mxu0 0.0
        %851 = vmatprep.subr.mxu0 0.0
        %852 = vmatpush1.msra.mxu0 0.0
        %853 = vmatprep.mubr.f32.mxu0 0.0
        %854 = vmatmul.mubr.f32.gmra.mrb[0].mxu0 %v780
        %v855 = vpop.f32.mrb[0].mxu0
        %v856 = vadd.f32 %v771, %v855
        %v857 = vpop.f32.mrb[0].mxu0
        %858 = vmatprep.mubr.f32.mxu0 0.0
        %859 = vmatmul.mubr.f32.gmra.mrb[0].mxu0 %v783
        %v860 = vpop.f32.mrb[0].mxu0
        %v861 = vadd.f32 %v776, %v860
        %v862 = vpop.f32.mrb[0].mxu0
        %863 = vdwg.mxu0
        %v864 = vld [vmem:[%s374] sm:$0xff]
        %v865 = vld [vmem:[%s374 + $0x8] sm:$0x1]
        %v866 = vadd.f32 %v864, %v856
        %v867 = vadd.f32 %v865, %v861
        %868 = vst.msk [vmem:[%s374] sm:$0xff] %vm473, %v866
        %vm869 = vcmask 57344
        %870 = vst.msk [vmem:[%s374 + $0x8] sm:$0x1] %vm869, %v867
      $region68: #{tpu_custom_call.1} parent=55 // pred_fallthru
        _
      %p871 = scmp.lt.s32.totalorder %s25, 1
      %s872 = scalar_select %p871, %s25, 1
      %s873 = smul.addr %s872, 2
      %s874 = smul.addr %s873, 8
      %s875 = scalar_lea.vmem %s9, %s874
      // Predicated region
      $region69: #{tpu_custom_call.1} parent=55 // pred_check
        %p876 = pneg %p255
      $region70: #{tpu_custom_call.1} parent=55 // pred_check_branch
        %878 = sbr.rel (%p876) target = $region72
      $region71: #{tpu_custom_call.1} parent=55 // pred_region
        _
      $region72: #{tpu_custom_call.1} parent=55 // pred_fallthru
        _
    $region56: #{tpu_custom_call.1} parent=5 // pred_fallthru
      _
    %p879 = scmp.le.s32.totalorder 2, %s15
    // Predicated region
    $region73: #{tpu_custom_call.1} parent=5 // pred_check
      %p880 = pneg %p879
    $region74: #{tpu_custom_call.1} parent=5 // pred_check_branch
      %882 = sbr.rel (%p880) target = $region76
    $region75: #{tpu_custom_call.1} parent=5 // pred_region
      %s883 = ssub.s32 %s15, 2
      // Predicated region
      $region77: #{tpu_custom_call.1} parent=75 // pred_check
        %p884 = pneg %p261
      $region78: #{tpu_custom_call.1} parent=75 // pred_check_branch
        %886 = sbr.rel (%p884) target = $region80
      $region79: #{tpu_custom_call.1} parent=75 // pred_region
        %p887 = scmp.lt.s32.totalorder %s28, 1
        %s888 = scalar_select %p887, %s28, 1
        %s889 = smul.addr %s888, 2
        %s890 = smul.addr %s889, 8
        %s891 = scalar_lea.vmem %s9, %s890
      $region80: #{tpu_custom_call.1} parent=75 // pred_fallthru
        _
    $region76: #{tpu_custom_call.1} parent=5 // pred_fallthru
      _
  $region6: #{tpu_custom_call.1} parent=0 // loop_footer
    %s19 = sadd.s32 1, %s15
  $region7: #{tpu_custom_call.1} parent=0 // loop_footer_branch
    %14 = sbr.rel target = $region3
  $region8: #{tpu_custom_call.1} parent=0 // loop_exit
    _

</llo_original>
